<compile_context>
chip_gen: v6e
topology: v6e:2x2x1
jax: 0.10.0
libtpu: 0.0.40
codegen_flags: <defaults>
</compile_context>

<pallas_src>
import jax
import jax.numpy as jnp
from jax.experimental import pallas as pl
from jax.experimental.pallas import tpu as pltpu


_OUT_LANES = 128           # folded partial width: lane-dense, unmasked stores
_STRIPE_ELEMS = 64 * 1024  # elems per in-kernel stripe (bounds live temporaries)


def _round_up(x, m):
    return ((x + m - 1) // m) * m


def _pick_block_config():
    """Returns (elements per grid block, vmem_limit_bytes) per TPU generation."""
    try:
        vmem = pltpu.get_tpu_info().vmem_capacity_bytes
    except Exception:
        vmem = None
    if vmem is not None and vmem >= 96 * 1024 * 1024:
        # v5e / v6e (128 MiB physical VMEM): 8 MiB f32 per input per step.
        return 2 ** 21, 64 * 1024 * 1024
    # v7x (64 MiB physical) or unknown: 4 MiB f32 per input per step;
    # 3 inputs x 2 pipeline buffers x 4 MiB = 24 MiB, comfortably under limit.
    return 2 ** 20, 32 * 1024 * 1024


def _make_partial_sum_kernel(rows, blk_rows, stripe_rows, lanes, needs_mask):
    """Kernel: weighted BCE over one (blk_rows, lanes) block, folded to (8,128)."""
    n_stripes = blk_rows // stripe_rows

    def kernel(pred_ref, true_ref, conf_ref, out_ref):
        row0 = pl.program_id(0) * blk_rows
        if needs_mask:
            # Hoisted once per grid step (JAX does not CSE broadcast_in_dim).
            local_row = jax.lax.broadcasted_iota(jnp.int32, (stripe_rows, lanes), 0)

        def stripe(i, acc):
            r = pl.multiple_of(i * stripe_rows, stripe_rows)
            x = pred_ref[pl.ds(r, stripe_rows), :].astype(jnp.float32)  # logits
            z = true_ref[pl.ds(r, stripe_rows), :].astype(jnp.float32)  # targets
            c = conf_ref[pl.ds(r, stripe_rows), :].astype(jnp.float32)  # weights
            # Numerically stable BCE-with-logits (torch's formulation):
            #   max(x, 0) - x*z + log1p(exp(-|x|))
            bce = jnp.maximum(x, 0.0) - x * z + jnp.log1p(jnp.exp(-jnp.abs(x)))
            w = c * bce
            if needs_mask:
                # The last grid block may read past the end of the array; those
                # rows hold garbage (possibly NaN/Inf).  Select them away --
                # never multiply by zero (NaN * 0 = NaN).
                w = jnp.where(row0 + r + local_row < rows, w, 0.0)
            # Fold to (8, _OUT_LANES): sublane- and lane-group splits are vreg
            # aligned, so these sums are pure VPU vreg adds (no cross-lane XLU).
            part = w.reshape(stripe_rows // 8, 8, lanes // _OUT_LANES, _OUT_LANES)
            part = part.sum(axis=2).sum(axis=0)
            return acc + part

        acc0 = jnp.zeros((8, _OUT_LANES), jnp.float32)
        out_ref[...] = jax.lax.fori_loop(0, n_stripes, stripe, acc0)

    return kernel


def confidence_ae_loss(pred, true, confidence):
    """pred, true, confidence: identically shaped (..., D). Returns scalar f32."""
    assert pred.shape == true.shape == confidence.shape

    # mean over all leading (non-last) dims == divide by number of rows.
    n_mean = 1
    for s in pred.shape[:-1]:
        n_mean *= s
    total = pred.size

    flat_p = pred.reshape(-1)
    flat_t = true.reshape(-1)
    flat_c = confidence.reshape(-1)

    # Lane-dense packing: widest lane count that exactly divides the element
    # count => the reshape below is free (no data movement, no jnp.pad).
    lanes = None
    for cand in (1024, 512, 256, 128):
        if total % cand == 0:
            lanes = cand
            break
    if lanes is None:
        # Rare fallback (total not a multiple of 128): minimal zero-pad up to
        # the next 128 elements.  pred=0,true=0 gives bce=log(2) but the zero
        # confidence makes the padded contribution exactly 0.
        lanes = 128
        pad = _round_up(total, lanes) - total
        flat_p = jnp.pad(flat_p, (0, pad))
        flat_t = jnp.pad(flat_t, (0, pad))
        flat_c = jnp.pad(flat_c, (0, pad))
        total = total + pad

    rows = total // lanes
    p2 = flat_p.reshape(rows, lanes)
    t2 = flat_t.reshape(rows, lanes)
    c2 = flat_c.reshape(rows, lanes)

    block_elems, vmem_limit = _pick_block_config()

    # Stripe = unit of in-kernel work; bounds live f32 temporaries to ~256 KiB
    # so large grid blocks never blow compiler scratch / spill.
    stripe_rows = max(8, min(_STRIPE_ELEMS // lanes, _round_up(rows, 8)))
    blk_rows = min(block_elems // lanes, _round_up(rows, stripe_rows))
    blk_rows = max(stripe_rows, (blk_rows // stripe_rows) * stripe_rows)

    n_blocks = pl.cdiv(rows, blk_rows)
    needs_mask = (rows % blk_rows) != 0

    kernel = _make_partial_sum_kernel(rows, blk_rows, stripe_rows, lanes, needs_mask)

    in_spec = pl.BlockSpec((blk_rows, lanes), lambda i: (i, 0))
    out_spec = pl.BlockSpec((8, _OUT_LANES), lambda i: (i, 0))

    partials = pl.pallas_call(
        kernel,
        out_shape=jax.ShapeDtypeStruct((n_blocks * 8, _OUT_LANES), jnp.float32),
        grid_spec=pltpu.PrefetchScalarGridSpec(
            num_scalar_prefetch=0,
            grid=(n_blocks,),
            in_specs=[in_spec, in_spec, in_spec],
            out_specs=out_spec,
        ),
        compiler_params=pltpu.CompilerParams(
            # Independent per-block partials -> fully parallel grid, no serial
            # accumulator.  (On v7x, if xprof shows one TensorCore idle, switch
            # to an explicit leading core axis with pltpu.CORE_PARALLEL.)
            dimension_semantics=("parallel",),
            vmem_limit_bytes=vmem_limit,
        ),
    )(p2, t2, c2)

    # Tiny final reduction + mean in plain JAX (keeps the kernel grid fully
    # parallel and preserves f32 precision).
    return jnp.sum(partials) / jnp.float32(n_mean)


def _reference_loss(pred, true, confidence):
    x = pred.astype(jnp.float32)
    z = true.astype(jnp.float32)
    c = confidence.astype(jnp.float32)
    bce = jnp.maximum(x, 0.0) - x * z + jnp.log1p(jnp.exp(-jnp.abs(x)))
    return jnp.mean(jnp.sum(c * bce, axis=-1))


if __name__ == "__main__":
    key = jax.random.PRNGKey(0)
    k1, k2, k3 = jax.random.split(key, 3)

    # 1) small f32 input (lane-aligned, masked ragged block)
    B, S, D = 2, 8, 32
    pred = jax.random.normal(k1, (B, S, D), dtype=jnp.float32)
    true = (jax.random.uniform(k2, (B, S, D)) > 0.5).astype(jnp.float32)
    conf = jax.random.uniform(k3, (B, S, D), dtype=jnp.float32)
    out = jax.block_until_ready(confidence_ae_loss(pred, true, conf))
    ref = _reference_loss(pred, true, conf)
    assert jnp.allclose(out, ref, rtol=1e-5, atol=1e-5), (out, ref)

    # 2) native bf16 streaming (no upcast outside the kernel)
    pred_bf, true_bf, conf_bf = (a.astype(jnp.bfloat16) for a in (pred, true, conf))
    out = jax.block_until_ready(confidence_ae_loss(pred_bf, true_bf, conf_bf))
    ref = _reference_loss(pred_bf, true_bf, conf_bf)
    assert jnp.allclose(out, ref, rtol=2e-3, atol=2e-3), (out, ref)

    # 3) misaligned element count (rare minimal-pad fallback path)
    shape = (3, 5, 7)
    pred3 = jax.random.normal(k1, shape, dtype=jnp.float32)
    true3 = (jax.random.uniform(k2, shape) > 0.5).astype(jnp.float32)
    conf3 = jax.random.uniform(k3, shape, dtype=jnp.float32)
    out = jax.block_until_ready(confidence_ae_loss(pred3, true3, conf3))
    ref = _reference_loss(pred3, true3, conf3)
    assert jnp.allclose(out, ref, rtol=1e-5, atol=1e-5), (out, ref)

    # 4) multi-stripe / multi-block with a ragged row tail
    shape = (2, 600, 1024)
    pred4 = jax.random.normal(k1, shape, dtype=jnp.float32)
    true4 = (jax.random.uniform(k2, shape) > 0.5).astype(jnp.float32)
    conf4 = jax.random.uniform(k3, shape, dtype=jnp.float32)
    out = jax.block_until_ready(confidence_ae_loss(pred4, true4, conf4))
    ref = _reference_loss(pred4, true4, conf4)
    assert jnp.allclose(out, ref, rtol=1e-4, atol=1e-4), (out, ref)

    print("KERNEL_OK")
</pallas_src>

<mosaic_0001>
module attributes {stable_mosaic.version = 11 : i64} {
  func.func @kernel(%arg0: i32, %arg1: memref<8x512xf32, #tpu.memory_space<vmem>>, %arg2: memref<8x512xf32, #tpu.memory_space<vmem>>, %arg3: memref<8x512xf32, #tpu.memory_space<vmem>>, %arg4: memref<8x128xf32, #tpu.memory_space<vmem>>) attributes {dimension_semantics = [#tpu.dimension_semantics<parallel>], iteration_bounds = array<i64: 1>, scalar_prefetch = 0 : i64, scratch_operands = 0 : i64, tpu.core_type = #tpu.core_type<tc>, window_params = [{transform_indices = @transform_0, window_bounds = array<i64: 8, 512>}, {transform_indices = @transform_1, window_bounds = array<i64: 8, 512>}, {transform_indices = @transform_2, window_bounds = array<i64: 8, 512>}, {transform_indices = @transform_3, window_bounds = array<i64: 8, 128>}]} {
    %c8_i32 = arith.constant 8 : i32
    %0 = arith.muli %arg0, %c8_i32 : i32
    %1 = tpu.iota {dimensions = array<i32: 0>} : vector<8x512xi32>
    %cst = arith.constant 0.000000e+00 : f32
    %2 = vector.broadcast %cst : f32 to vector<8x128xf32>
    %c0_i32 = arith.constant 0 : i32
    %c8_i32_0 = arith.constant 8 : i32
    %3 = arith.muli %c0_i32, %c8_i32_0 : i32
    %4 = tpu.assume_multiple %3, 8 : i32
    %5 = arith.index_cast %4 : i32 to index
    %c0 = arith.constant 0 : index
    %6 = vector.load %arg1[%5, %c0] : memref<8x512xf32, #tpu.memory_space<vmem>>, vector<8x512xf32>
    %7 = arith.index_cast %4 : i32 to index
    %c0_1 = arith.constant 0 : index
    %8 = vector.load %arg2[%7, %c0_1] : memref<8x512xf32, #tpu.memory_space<vmem>>, vector<8x512xf32>
    %9 = arith.index_cast %4 : i32 to index
    %c0_2 = arith.constant 0 : index
    %10 = vector.load %arg3[%9, %c0_2] : memref<8x512xf32, #tpu.memory_space<vmem>>, vector<8x512xf32>
    %cst_3 = arith.constant 0.000000e+00 : f32
    %11 = vector.broadcast %cst_3 : f32 to vector<8x512xf32>
    %12 = arith.maximumf %6, %11 : vector<8x512xf32>
    %13 = arith.mulf %6, %8 : vector<8x512xf32>
    %14 = arith.subf %12, %13 : vector<8x512xf32>
    %15 = math.absf %6 : vector<8x512xf32>
    %cst_4 = arith.constant 0.000000e+00 : f32
    %16 = vector.broadcast %cst_4 : f32 to vector<8x512xf32>
    %17 = arith.subf %16, %15 : vector<8x512xf32>
    %18 = math.exp %17 : vector<8x512xf32>
    %19 = math.log1p %18 : vector<8x512xf32>
    %20 = arith.addf %14, %19 : vector<8x512xf32>
    %21 = arith.mulf %10, %20 : vector<8x512xf32>
    %22 = arith.addi %0, %4 : i32
    %23 = vector.broadcast %22 : i32 to vector<8x512xi32>
    %24 = arith.addi %23, %1 : vector<8x512xi32>
    %c1_i32 = arith.constant 1 : i32
    %25 = vector.broadcast %c1_i32 : i32 to vector<8x512xi32>
    %26 = arith.cmpi slt, %24, %25 : vector<8x512xi32>
    %cst_5 = arith.constant 0.000000e+00 : f32
    %27 = vector.broadcast %cst_5 : f32 to vector<8x512xf32>
    %28 = arith.select %26, %21, %27 : vector<8x512xi1>, vector<8x512xf32>
    %29 = vector.shape_cast %28 : vector<8x512xf32> to vector<1x8x4x128xf32>
    %cst_6 = arith.constant dense<0.000000e+00> : vector<1x8x128xf32>
    %30 = vector.multi_reduction <add>, %29, %cst_6 [2] : vector<1x8x4x128xf32> to vector<1x8x128xf32>
    %cst_7 = arith.constant dense<0.000000e+00> : vector<8x128xf32>
    %31 = vector.multi_reduction <add>, %30, %cst_7 [0] : vector<1x8x128xf32> to vector<8x128xf32>
    %32 = arith.addf %2, %31 : vector<8x128xf32>
    %c1_i32_8 = arith.constant 1 : i32
    %c0_9 = arith.constant 0 : index
    %c0_10 = arith.constant 0 : index
    %33 = vector.load %arg4[%c0_9, %c0_10] : memref<8x128xf32, #tpu.memory_space<vmem>>, vector<8x128xf32>
    tpu.vector_store %arg4[%c0_9, %c0_10], %32 {strides = array<i32>} : memref<8x128xf32, #tpu.memory_space<vmem>>, vector<8x128xf32>,
    return
  }
  func.func @transform_0(%arg0: i32) -> (i32, i32) {
    %c0_i32 = arith.constant 0 : i32
    %c0_i32_0 = arith.constant 0 : i32
    return %arg0, %c0_i32 : i32, i32
  }
  func.func @transform_1(%arg0: i32) -> (i32, i32) {
    %c0_i32 = arith.constant 0 : i32
    %c0_i32_0 = arith.constant 0 : i32
    return %arg0, %c0_i32 : i32, i32
  }
  func.func @transform_2(%arg0: i32) -> (i32, i32) {
    %c0_i32 = arith.constant 0 : i32
    %c0_i32_0 = arith.constant 0 : i32
    return %arg0, %c0_i32 : i32, i32
  }
  func.func @transform_3(%arg0: i32) -> (i32, i32) {
    %c0_i32 = arith.constant 0 : i32
    %c0_i32_0 = arith.constant 0 : i32
    return %arg0, %c0_i32 : i32, i32
  }
}

</mosaic_0001>

<llo_original>
// kernel: tpu_custom_call.1
$region0: #{tpu_custom_call.1}
  #allocation0 [shape = 'u32[]', space=smem, size = 0x4, offset = 0x4, fixed_abs, tag = 'smem constant byte address 0x4 - core index']
  #allocation1 [shape = 'u32[144,128]{1,0:T(1,128)}', space=vmem, size = 0x12000, scoped, tag = 'internal scratch']
  %s0 = inlined_call_operand.hbm [shape: f32[1,512], index: 0, kind: input, shape index: {}]
  %s1 = inlined_call_operand.hbm [shape: f32[1,512], index: 1, kind: input, shape index: {}]
  %s2 = inlined_call_operand.hbm [shape: f32[1,512], index: 2, kind: input, shape index: {}]
  %s3 = inlined_call_operand.hbm [shape: f32[8,128], index: 3, kind: output, shape index: {}]
  %s4 = sld [smem:[#allocation0]]
  $region34: #{tpu_custom_call.1} parent=0
    _
  %s6 = ssub.s32 1, %s4
  %s7 = scalar_select 0, %s6, %s4
  $region1: #{tpu_custom_call.1} parent=0
    #allocation2 [shape = 'u8[16384]{0}', space=vmem, size = 0x4000, scoped, tag = 'input window, operand 0, single buffered']
    #allocation3 [shape = 's32[1]{0}', space=sflag, size = 0x4, scoped, tag = 'scoped memory for tpu_custom_call.1']
    #allocation4 [shape = 's32[1]{0}', space=sflag, size = 0x4, scoped, tag = 'scoped memory for tpu_custom_call.1']
    #allocation5 [shape = 'u8[16384]{0}', space=vmem, size = 0x4000, scoped, tag = 'input window, operand 1, single buffered']
    #allocation6 [shape = 's32[1]{0}', space=sflag, size = 0x4, scoped, tag = 'scoped memory for tpu_custom_call.1']
    #allocation7 [shape = 'u8[16384]{0}', space=vmem, size = 0x4000, scoped, tag = 'input window, operand 2, single buffered']
    #allocation8 [shape = 'u8[4096]{0}', space=vmem, size = 0x1000, scoped, tag = 'output window, operand 0, single buffered']
    %8 = vsyncpa [#allocation3], 0
    %9 = vsyncpa [#allocation6], 0
    %10 = vsyncpa [#allocation4], 0
    // Predicated region
    $region2: #{tpu_custom_call.1} parent=1 // pred_check
      _
    $region3: #{tpu_custom_call.1} parent=1 // pred_check_branch
      %12 = sbr.rel (0) target = $region5
    $region4: #{tpu_custom_call.1} parent=1 // pred_region
      %s14 = ssub.s32 512, 64
      %15 = vsyncadd [#allocation3], %s14
      %s16 = sshll.u32 [#allocation2], 4
      %s17 = int_to_ptr.vmem [resolvable:$true] %s16
      %22 = dma.hbm_to_vmem [thread:$0]  %s0, 64, %s17, [#allocation3], 64, 64, 4
    $region5: #{tpu_custom_call.1} parent=1 // pred_fallthru
      _
    // Predicated region
    $region6: #{tpu_custom_call.1} parent=1 // pred_check
      _
    $region7: #{tpu_custom_call.1} parent=1 // pred_check_branch
      %24 = sbr.rel (0) target = $region9
    $region8: #{tpu_custom_call.1} parent=1 // pred_region
      %s26 = ssub.s32 512, 64
      %27 = vsyncadd [#allocation6], %s26
      %s28 = sshll.u32 [#allocation5], 4
      %s29 = int_to_ptr.vmem [resolvable:$true] %s28
      %34 = dma.hbm_to_vmem [thread:$0]  %s1, 64, %s29, [#allocation6], 64, 64, 4
    $region9: #{tpu_custom_call.1} parent=1 // pred_fallthru
      _
    // Predicated region
    $region10: #{tpu_custom_call.1} parent=1 // pred_check
      _
    $region11: #{tpu_custom_call.1} parent=1 // pred_check_branch
      %36 = sbr.rel (0) target = $region13
    $region12: #{tpu_custom_call.1} parent=1 // pred_region
      %s38 = ssub.s32 512, 64
      %39 = vsyncadd [#allocation6], %s38
      %s40 = sshll.u32 [#allocation7], 4
      %s41 = int_to_ptr.vmem [resolvable:$true] %s40
      %46 = dma.hbm_to_vmem [thread:$0]  %s2, 64, %s41, [#allocation6], 64, 64, 4
    $region13: #{tpu_custom_call.1} parent=1 // pred_fallthru
      _
    // Predicated region
    $region14: #{tpu_custom_call.1} parent=1 // pred_check
      _
    $region15: #{tpu_custom_call.1} parent=1 // pred_check_branch
      %48 = sbr.rel (0) target = $region17
    $region16: #{tpu_custom_call.1} parent=1 // pred_region
      %49 = dma.done [#allocation3], 512
    $region17: #{tpu_custom_call.1} parent=1 // pred_fallthru
      _
    // Predicated region
    $region18: #{tpu_custom_call.1} parent=1 // pred_check
      _
    $region19: #{tpu_custom_call.1} parent=1 // pred_check_branch
      %51 = sbr.rel (0) target = $region21
    $region20: #{tpu_custom_call.1} parent=1 // pred_region
      %52 = dma.done [#allocation6], 512
    $region21: #{tpu_custom_call.1} parent=1 // pred_fallthru
      _
    // Predicated region
    $region22: #{tpu_custom_call.1} parent=1 // pred_check
      _
    $region23: #{tpu_custom_call.1} parent=1 // pred_check_branch
      %54 = sbr.rel (0) target = $region25
    $region24: #{tpu_custom_call.1} parent=1 // pred_region
      %55 = dma.done [#allocation6], 512
    $region25: #{tpu_custom_call.1} parent=1 // pred_fallthru
      _
    %s56 = smul.u32 0, 8
    %v57 = vlaneseq
    %v58 = vshrl.u32 %v57, 7
    %s59 = smul.u32 0, 4
    %s60 = scalar_lea.vmem [#allocation2], %s59
    %v61 = vld [vmem:[%s60] sm:$0xf]
    %v62 = vld [vmem:[%s60 + $0x4] sm:$0xf]
    %v63 = vld [vmem:[%s60 + $0x8] sm:$0xf]
    %v64 = vld [vmem:[%s60 + $0xc] sm:$0xf]
    %v65 = vld [vmem:[%s60 + $0x10] sm:$0xf]
    %v66 = vld [vmem:[%s60 + $0x14] sm:$0xf]
    %v67 = vld [vmem:[%s60 + $0x18] sm:$0xf]
    %v68 = vld [vmem:[%s60 + $0x1c] sm:$0xf]
    %s69 = scalar_lea.vmem [#allocation5], %s59
    %v70 = vld [vmem:[%s69] sm:$0xf]
    %v71 = vld [vmem:[%s69 + $0x4] sm:$0xf]
    %v72 = vld [vmem:[%s69 + $0x8] sm:$0xf]
    %v73 = vld [vmem:[%s69 + $0xc] sm:$0xf]
    %v74 = vld [vmem:[%s69 + $0x10] sm:$0xf]
    %v75 = vld [vmem:[%s69 + $0x14] sm:$0xf]
    %v76 = vld [vmem:[%s69 + $0x18] sm:$0xf]
    %v77 = vld [vmem:[%s69 + $0x1c] sm:$0xf]
    %s78 = scalar_lea.vmem [#allocation7], %s59
    %v79 = vld [vmem:[%s78] sm:$0xf]
    %v80 = vld [vmem:[%s78 + $0x4] sm:$0xf]
    %v81 = vld [vmem:[%s78 + $0x8] sm:$0xf]
    %v82 = vld [vmem:[%s78 + $0xc] sm:$0xf]
    %v83 = vld [vmem:[%s78 + $0x10] sm:$0xf]
    %v84 = vld [vmem:[%s78 + $0x14] sm:$0xf]
    %v85 = vld [vmem:[%s78 + $0x18] sm:$0xf]
    %v86 = vld [vmem:[%s78 + $0x1c] sm:$0xf]
    %v87 = vmax.f32 %v61, 0.0
    %v88 = vmax.f32 %v62, 0.0
    %v89 = vmax.f32 %v63, 0.0
    %v90 = vmax.f32 %v64, 0.0
    %v91 = vmax.f32 %v65, 0.0
    %v92 = vmax.f32 %v66, 0.0
    %v93 = vmax.f32 %v67, 0.0
    %v94 = vmax.f32 %v68, 0.0
    %v95 = vmul.f32 %v61, %v70
    %v96 = vmul.f32 %v62, %v71
    %v97 = vmul.f32 %v63, %v72
    %v98 = vmul.f32 %v64, %v73
    %v99 = vmul.f32 %v65, %v74
    %v100 = vmul.f32 %v66, %v75
    %v101 = vmul.f32 %v67, %v76
    %v102 = vmul.f32 %v68, %v77
    %v103 = vsub.f32 %v87, %v95
    %v104 = vsub.f32 %v88, %v96
    %v105 = vsub.f32 %v89, %v97
    %v106 = vsub.f32 %v90, %v98
    %v107 = vsub.f32 %v91, %v99
    %v108 = vsub.f32 %v92, %v100
    %v109 = vsub.f32 %v93, %v101
    %v110 = vsub.f32 %v94, %v102
    %v111 = vand.u32 2147483647, %v61
    %v112 = vand.u32 2147483647, %v62
    %v113 = vand.u32 2147483647, %v63
    %v114 = vand.u32 2147483647, %v64
    %v115 = vand.u32 2147483647, %v65
    %v116 = vand.u32 2147483647, %v66
    %v117 = vand.u32 2147483647, %v67
    %v118 = vand.u32 2147483647, %v68
    %v119 = vsub.f32 0.0, %v111
    %v120 = vsub.f32 0.0, %v112
    %v121 = vsub.f32 0.0, %v113
    %v122 = vsub.f32 0.0, %v114
    %v123 = vsub.f32 0.0, %v115
    %v124 = vsub.f32 0.0, %v116
    %v125 = vsub.f32 0.0, %v117
    %v126 = vsub.f32 0.0, %v118
    %v127 = vmul.f32 %v119, 1.442695
    %v128 = vpow.pop %v127
    %v129 = vmul.f32 %v120, 1.442695
    %v130 = vpow.pop %v129
    %v131 = vmul.f32 %v121, 1.442695
    %v132 = vpow.pop %v131
    %v133 = vmul.f32 %v122, 1.442695
    %v134 = vpow.pop %v133
    %v135 = vmul.f32 %v123, 1.442695
    %v136 = vpow.pop %v135
    %v137 = vmul.f32 %v124, 1.442695
    %v138 = vpow.pop %v137
    %v139 = vmul.f32 %v125, 1.442695
    %v140 = vpow.pop %v139
    %v141 = vmul.f32 %v126, 1.442695
    %v142 = vpow.pop %v141
    %v143 = vadd.f32 %v128, 1.0
    %v144 = vlog2.pop %v143
    %v145 = vmul.f32 %v144, 0.6931472
    %v146 = vmul.f32 -0.5, %v128
    %v147 = vadd.f32 %v146, 1.0
    %v148 = vmul.f32 %v147, %v128
    %v149 = vand.u32 2147483647, %v128
    %vm150 = vcmp.lt.f32.partialorder %v149, 0.0004427343
    %v151 = vsel %vm150, %v148, %v145
    %v152 = vadd.f32 %v130, 1.0
    %v153 = vlog2.pop %v152
    %v154 = vmul.f32 %v153, 0.6931472
    %v155 = vmul.f32 -0.5, %v130
    %v156 = vadd.f32 %v155, 1.0
    %v157 = vmul.f32 %v156, %v130
    %v158 = vand.u32 2147483647, %v130
    %vm159 = vcmp.lt.f32.partialorder %v158, 0.0004427343
    %v160 = vsel %vm159, %v157, %v154
    %v161 = vadd.f32 %v132, 1.0
    %v162 = vlog2.pop %v161
    %v163 = vmul.f32 %v162, 0.6931472
    %v164 = vmul.f32 -0.5, %v132
    %v165 = vadd.f32 %v164, 1.0
    %v166 = vmul.f32 %v165, %v132
    %v167 = vand.u32 2147483647, %v132
    %vm168 = vcmp.lt.f32.partialorder %v167, 0.0004427343
    %v169 = vsel %vm168, %v166, %v163
    %v170 = vadd.f32 %v134, 1.0
    %v171 = vlog2.pop %v170
    %v172 = vmul.f32 %v171, 0.6931472
    %v173 = vmul.f32 -0.5, %v134
    %v174 = vadd.f32 %v173, 1.0
    %v175 = vmul.f32 %v174, %v134
    %v176 = vand.u32 2147483647, %v134
    %vm177 = vcmp.lt.f32.partialorder %v176, 0.0004427343
    %v178 = vsel %vm177, %v175, %v172
    %v179 = vadd.f32 %v136, 1.0
    %v180 = vlog2.pop %v179
    %v181 = vmul.f32 %v180, 0.6931472
    %v182 = vmul.f32 -0.5, %v136
    %v183 = vadd.f32 %v182, 1.0
    %v184 = vmul.f32 %v183, %v136
    %v185 = vand.u32 2147483647, %v136
    %vm186 = vcmp.lt.f32.partialorder %v185, 0.0004427343
    %v187 = vsel %vm186, %v184, %v181
    %v188 = vadd.f32 %v138, 1.0
    %v189 = vlog2.pop %v188
    %v190 = vmul.f32 %v189, 0.6931472
    %v191 = vmul.f32 -0.5, %v138
    %v192 = vadd.f32 %v191, 1.0
    %v193 = vmul.f32 %v192, %v138
    %v194 = vand.u32 2147483647, %v138
    %vm195 = vcmp.lt.f32.partialorder %v194, 0.0004427343
    %v196 = vsel %vm195, %v193, %v190
    %v197 = vadd.f32 %v140, 1.0
    %v198 = vlog2.pop %v197
    %v199 = vmul.f32 %v198, 0.6931472
    %v200 = vmul.f32 -0.5, %v140
    %v201 = vadd.f32 %v200, 1.0
    %v202 = vmul.f32 %v201, %v140
    %v203 = vand.u32 2147483647, %v140
    %vm204 = vcmp.lt.f32.partialorder %v203, 0.0004427343
    %v205 = vsel %vm204, %v202, %v199
    %v206 = vadd.f32 %v142, 1.0
    %v207 = vlog2.pop %v206
    %v208 = vmul.f32 %v207, 0.6931472
    %v209 = vmul.f32 -0.5, %v142
    %v210 = vadd.f32 %v209, 1.0
    %v211 = vmul.f32 %v210, %v142
    %v212 = vand.u32 2147483647, %v142
    %vm213 = vcmp.lt.f32.partialorder %v212, 0.0004427343
    %v214 = vsel %vm213, %v211, %v208
    %v215 = vadd.f32 %v103, %v151
    %v216 = vadd.f32 %v104, %v160
    %v217 = vadd.f32 %v105, %v169
    %v218 = vadd.f32 %v106, %v178
    %v219 = vadd.f32 %v107, %v187
    %v220 = vadd.f32 %v108, %v196
    %v221 = vadd.f32 %v109, %v205
    %v222 = vadd.f32 %v110, %v214
    %v223 = vmul.f32 %v79, %v215
    %v224 = vmul.f32 %v80, %v216
    %v225 = vmul.f32 %v81, %v217
    %v226 = vmul.f32 %v82, %v218
    %v227 = vmul.f32 %v83, %v219
    %v228 = vmul.f32 %v84, %v220
    %v229 = vmul.f32 %v85, %v221
    %v230 = vmul.f32 %v86, %v222
    %s231 = sadd.s32 %s56, 0
    %v232 = vstv %s231
    %v233 = vadd.s32 %v232, %v58
    %vm234 = vcmp.lt.s32.totalorder %v233, 1
    %v243 = vcombine.low %v223, %v224
    %v244 = vcombine.low %v225, %v226
    %v245 = vcombine.low %v227, %v228
    %v246 = vcombine.low %v229, %v230
    %v248 = vunpack.c.l.s4 1966171168
    %v249 = vunpack.c.0.s8 %v248
    %v250 = vlaneseq
    %v251 = vshrl.u32 %v250, 7
    %v252 = vsub.s32 %v249, %v251
    %v253 = vrot.slane %v243, %v252
    %v255 = vunpack.c.l.s4 1966171168
    %v256 = vunpack.c.0.s8 %v255
    %v257 = vlaneseq
    %v258 = vshrl.u32 %v257, 7
    %v259 = vsub.s32 %v256, %v258
    %v260 = vrot.slane %v244, %v259
    %v262 = vunpack.c.l.s4 1966171168
    %v263 = vunpack.c.0.s8 %v262
    %v264 = vlaneseq
    %v265 = vshrl.u32 %v264, 7
    %v266 = vsub.s32 %v263, %v265
    %v267 = vrot.slane %v245, %v266
    %v269 = vunpack.c.l.s4 1966171168
    %v270 = vunpack.c.0.s8 %v269
    %v271 = vlaneseq
    %v272 = vshrl.u32 %v271, 7
    %v273 = vsub.s32 %v270, %v272
    %v274 = vrot.slane %v246, %v273
    %v275 = vcombine.low %v253, %v260
    %v276 = vcombine.high %v253, %v260
    %v277 = vcombine.low %v267, %v274
    %v278 = vcombine.high %v267, %v274
    %v280 = vunpack.c.l.s4 1966171168
    %v281 = vunpack.c.0.s8 %v280
    %v282 = vlaneseq
    %v283 = vshrl.u32 %v282, 7
    %v284 = vsub.s32 %v281, %v283
    %v285 = vrot.slane %v275, %v284
    %v287 = vunpack.c.l.s4 1966171168
    %v288 = vunpack.c.0.s8 %v287
    %v289 = vlaneseq
    %v290 = vshrl.u32 %v289, 7
    %v291 = vsub.s32 %v288, %v290
    %v292 = vrot.slane %v276, %v291
    %v294 = vunpack.c.l.s4 1966171168
    %v295 = vunpack.c.0.s8 %v294
    %v296 = vlaneseq
    %v297 = vshrl.u32 %v296, 7
    %v298 = vsub.s32 %v295, %v297
    %v299 = vrot.slane %v277, %v298
    %v301 = vunpack.c.l.s4 1966171168
    %v302 = vunpack.c.0.s8 %v301
    %v303 = vlaneseq
    %v304 = vshrl.u32 %v303, 7
    %v305 = vsub.s32 %v302, %v304
    %v306 = vrot.slane %v278, %v305
    %v307 = vcombine.low %v285, %v299
    %v308 = vcombine.high %v285, %v299
    %v309 = vcombine.low %v292, %v306
    %v310 = vcombine.high %v292, %v306
    %v315 = vsel %vm234, %v307, 0.0
    %v316 = vsel %vm234, %v309, 0.0
    %v317 = vsel %vm234, %v308, 0.0
    %v318 = vsel %vm234, %v310, 0.0
    %v319 = vcombine.low %v315, %v317
    %v320 = vcombine.high %v315, %v317
    %v322 = vunpack.c.l.s4 1983009808
    %v323 = vunpack.c.0.s8 %v322
    %v324 = vlaneseq
    %v325 = vshrl.u32 %v324, 7
    %v326 = vsub.s32 %v323, %v325
    %v327 = vrot.slane %v319, %v326
    %v329 = vunpack.c.l.s4 1983009808
    %v330 = vunpack.c.0.s8 %v329
    %v331 = vlaneseq
    %v332 = vshrl.u32 %v331, 7
    %v333 = vsub.s32 %v330, %v332
    %v334 = vrot.slane %v320, %v333
    %v335 = vcombine.low %v316, %v318
    %v336 = vcombine.high %v316, %v318
    %v338 = vunpack.c.l.s4 1983009808
    %v339 = vunpack.c.0.s8 %v338
    %v340 = vlaneseq
    %v341 = vshrl.u32 %v340, 7
    %v342 = vsub.s32 %v339, %v341
    %v343 = vrot.slane %v335, %v342
    %v345 = vunpack.c.l.s4 1983009808
    %v346 = vunpack.c.0.s8 %v345
    %v347 = vlaneseq
    %v348 = vshrl.u32 %v347, 7
    %v349 = vsub.s32 %v346, %v348
    %v350 = vrot.slane %v336, %v349
    %v351 = vcombine.low %v327, %v343
    %v352 = vcombine.high %v327, %v343
    %v354 = vunpack.c.l.s4 1934713408
    %v355 = vunpack.c.0.s8 %v354
    %v356 = vlaneseq
    %v357 = vshrl.u32 %v356, 7
    %v358 = vsub.s32 %v355, %v357
    %v359 = vrot.slane %v351, %v358
    %v361 = vunpack.c.l.s4 1934713408
    %v362 = vunpack.c.0.s8 %v361
    %v363 = vlaneseq
    %v364 = vshrl.u32 %v363, 7
    %v365 = vsub.s32 %v362, %v364
    %v366 = vrot.slane %v352, %v365
    %v367 = vcombine.low %v334, %v350
    %v368 = vcombine.high %v334, %v350
    %v370 = vunpack.c.l.s4 1934713408
    %v371 = vunpack.c.0.s8 %v370
    %v372 = vlaneseq
    %v373 = vshrl.u32 %v372, 7
    %v374 = vsub.s32 %v371, %v373
    %v375 = vrot.slane %v367, %v374
    %v377 = vunpack.c.l.s4 1934713408
    %v378 = vunpack.c.0.s8 %v377
    %v379 = vlaneseq
    %v380 = vshrl.u32 %v379, 7
    %v381 = vsub.s32 %v378, %v380
    %v382 = vrot.slane %v368, %v381
    %v383 = vcombine.high %v359, 0.0
    %v384 = vcombine.high %v366, 0.0
    %v385 = vcombine.high %v375, 0.0
    %v386 = vcombine.high %v382, 0.0
    %vm387 = vcmask 1043456
    %v388 = vsel %vm387, %v359, 0.0
    %v389 = vrot.slane %v388, 4
    %v390 = vadd.f32 %v388, %v389
    %v391 = vrot.slane %v390, 2
    %v392 = vadd.f32 %v390, %v391
    %v393 = vrot.slane %v392, 1
    %v394 = vadd.f32 %v392, %v393
    %v395 = vsel %vm387, %v383, 0.0
    %v396 = vrot.slane %v395, 4
    %v397 = vadd.f32 %v395, %v396
    %v398 = vrot.slane %v397, 2
    %v399 = vadd.f32 %v397, %v398
    %v400 = vrot.slane %v399, 1
    %v401 = vadd.f32 %v399, %v400
    %v402 = vsel %vm387, %v366, 0.0
    %v403 = vrot.slane %v402, 4
    %v404 = vadd.f32 %v402, %v403
    %v405 = vrot.slane %v404, 2
    %v406 = vadd.f32 %v404, %v405
    %v407 = vrot.slane %v406, 1
    %v408 = vadd.f32 %v406, %v407
    %v409 = vsel %vm387, %v384, 0.0
    %v410 = vrot.slane %v409, 4
    %v411 = vadd.f32 %v409, %v410
    %v412 = vrot.slane %v411, 2
    %v413 = vadd.f32 %v411, %v412
    %v414 = vrot.slane %v413, 1
    %v415 = vadd.f32 %v413, %v414
    %v416 = vsel %vm387, %v375, 0.0
    %v417 = vrot.slane %v416, 4
    %v418 = vadd.f32 %v416, %v417
    %v419 = vrot.slane %v418, 2
    %v420 = vadd.f32 %v418, %v419
    %v421 = vrot.slane %v420, 1
    %v422 = vadd.f32 %v420, %v421
    %v423 = vsel %vm387, %v385, 0.0
    %v424 = vrot.slane %v423, 4
    %v425 = vadd.f32 %v423, %v424
    %v426 = vrot.slane %v425, 2
    %v427 = vadd.f32 %v425, %v426
    %v428 = vrot.slane %v427, 1
    %v429 = vadd.f32 %v427, %v428
    %v430 = vsel %vm387, %v382, 0.0
    %v431 = vrot.slane %v430, 4
    %v432 = vadd.f32 %v430, %v431
    %v433 = vrot.slane %v432, 2
    %v434 = vadd.f32 %v432, %v433
    %v435 = vrot.slane %v434, 1
    %v436 = vadd.f32 %v434, %v435
    %v437 = vsel %vm387, %v386, 0.0
    %v438 = vrot.slane %v437, 4
    %v439 = vadd.f32 %v437, %v438
    %v440 = vrot.slane %v439, 2
    %v441 = vadd.f32 %v439, %v440
    %v442 = vrot.slane %v441, 1
    %v443 = vadd.f32 %v441, %v442
    %v444 = vadd.f32 %v394, 0.0
    %v445 = vadd.f32 %v401, 0.0
    %v446 = vadd.f32 %v408, 0.0
    %v447 = vadd.f32 %v415, 0.0
    %v448 = vadd.f32 %v422, 0.0
    %v449 = vadd.f32 %v429, 0.0
    %v450 = vadd.f32 %v436, 0.0
    %v451 = vadd.f32 %v443, 0.0
    %v452 = vadd.f32 %v444, 0.0
    %v453 = vadd.f32 %v445, 0.0
    %v454 = vadd.f32 %v446, 0.0
    %v455 = vadd.f32 %v447, 0.0
    %v456 = vadd.f32 %v448, 0.0
    %v457 = vadd.f32 %v449, 0.0
    %v458 = vadd.f32 %v450, 0.0
    %v459 = vadd.f32 %v451, 0.0
    %vm468 = vcmask 1041409
    %v469 = vsel %vm468, %v453, %v452
    %vm470 = vcmask 1042434
    %v471 = vsel %vm470, %v454, %v469
    %vm472 = vcmask 1043459
    %v473 = vsel %vm472, %v455, %v471
    %vm474 = vcmask 1044484
    %v475 = vsel %vm474, %v456, %v473
    %vm476 = vcmask 1045509
    %v477 = vsel %vm476, %v457, %v475
    %vm478 = vcmask 1046534
    %v479 = vsel %vm478, %v458, %v477
    %vm480 = vcmask 1047559
    %v481 = vsel %vm480, %v459, %v479
    %483 = vst [vmem:[#allocation8] sm:$0xff] %v481
    // Predicated region
    $region26: #{tpu_custom_call.1} parent=1 // pred_check
      _
    $region27: #{tpu_custom_call.1} parent=1 // pred_check_branch
      %485 = sbr.rel (0) target = $region29
    $region28: #{tpu_custom_call.1} parent=1 // pred_region
      %s487 = ssub.s32 128, 128
      %488 = vsyncadd [#allocation4], %s487
      %s490 = sshll.u32 [#allocation8], 4
      %s491 = int_to_ptr.vmem [resolvable:$true] %s490
      %493 = dma.vmem_to_hbm [thread:$0]  %s491, 128, %s3, [#allocation4]
    $region29: #{tpu_custom_call.1} parent=1 // pred_fallthru
      _
    // Predicated region
    $region30: #{tpu_custom_call.1} parent=1 // pred_check
      _
    $region31: #{tpu_custom_call.1} parent=1 // pred_check_branch
      %495 = sbr.rel (0) target = $region33
    $region32: #{tpu_custom_call.1} parent=1 // pred_region
      %496 = dma.done [#allocation4], 128
    $region33: #{tpu_custom_call.1} parent=1 // pred_fallthru
      _
    %497 = vsyncpa [#allocation3], 1
    %498 = vsyncpa [#allocation6], 1
    %499 = vsyncpa [#allocation4], 1

</llo_original>
